<compile_context>
chip_gen: v7x
topology: tpu7x:2x2x1
jax: 0.10.0
libtpu: 0.0.40
codegen_flags: <defaults>
</compile_context>

<pallas_src>
import functools

import jax
import jax.numpy as jnp
from jax.experimental import pallas as pl
from jax.experimental.pallas import tpu as pltpu


# --- deterministic counter-based hash used for the dropout mask ------------------
_GOLDEN = 0x9E3779B9
_MIX1 = 0x7FEB352D
_MIX2 = 0x846CA68B


def _splitmix32(h):
    """splitmix32-style finalizer; h is uint32, ops are pure jnp (VPU-friendly)."""
    h = h ^ (h >> 16)
    h = h * jnp.uint32(_MIX1)
    h = h ^ (h >> 15)
    h = h * jnp.uint32(_MIX2)
    h = h ^ (h >> 16)
    return h


def _keep_threshold(keep_prob: float) -> int:
    # <= 2^-32 bias from the clamp; documented and negligible.
    return min(int(round(keep_prob * 4294967296.0)), 4294967295)


# --- kernel -----------------------------------------------------------------------
def _pe_add_dropout_kernel(seed_ref, x_ref, pe_ref, o_ref, *,
                           dropout_p, training, se_len):
    # x_ref:  (TB, TL) tile of the flattened [B, S*E] activations
    # pe_ref: (1,  TL) tile of the flattened [1, S*E] PE table (broadcast over rows)
    out = x_ref[...].astype(jnp.float32) + pe_ref[...].astype(jnp.float32)

    if training and dropout_p > 0.0:
        keep_prob = 1.0 - dropout_p
        tb, tl = out.shape
        # Global element index -> tiling-independent, deterministic dropout mask.
        row0 = (pl.program_id(0) * tb).astype(jnp.uint32)
        lane0 = (pl.program_id(1) * tl).astype(jnp.uint32)
        rows = jax.lax.broadcasted_iota(jnp.int32, (tb, tl), 0).astype(jnp.uint32)
        lanes = jax.lax.broadcasted_iota(jnp.int32, (tb, tl), 1).astype(jnp.uint32)
        ctr = (row0 + rows) * jnp.uint32(se_len) + (lane0 + lanes)
        h = _splitmix32(ctr + seed_ref[0].astype(jnp.uint32) * jnp.uint32(_GOLDEN))
        keep = h < jnp.uint32(_keep_threshold(keep_prob))
        # Inverted dropout: keep with prob (1-p), scale kept values by 1/(1-p).
        out = jnp.where(keep, out * jnp.float32(1.0 / keep_prob), jnp.zeros_like(out))

    o_ref[...] = out.astype(o_ref.dtype)


# --- parameter setup (matches the PyTorch __init__ formula) -----------------------
def make_pe_table(embed: int, pad_size: int) -> jnp.ndarray:
    """pe[pos, i] = pos / 10000 ** ((i // 2 * 2) / embed); sin on even i, cos on odd i."""
    pos = jnp.arange(pad_size, dtype=jnp.float32)[:, None]           # (S, 1)
    i = jnp.arange(embed, dtype=jnp.float32)[None, :]                # (1, E)
    angle = pos / jnp.power(10000.0, (jnp.floor(i / 2.0) * 2.0) / float(embed))
    even_mask = (jnp.arange(embed) % 2 == 0)[None, :]
    return jnp.where(even_mask, jnp.sin(angle), jnp.cos(angle)).astype(jnp.float32)


# --- plain-JAX replica of the in-kernel dropout mask (for verification) -----------
def dropout_keep_mask(B, S, E, seed, dropout_p):
    keep_prob = 1.0 - dropout_p
    SE = S * E
    rows = jnp.arange(B, dtype=jnp.int32)[:, None].astype(jnp.uint32)
    lanes = jnp.arange(SE, dtype=jnp.int32)[None, :].astype(jnp.uint32)
    ctr = rows * jnp.uint32(SE) + lanes
    h = _splitmix32(ctr + jnp.uint32(seed & 0xFFFFFFFF) * jnp.uint32(_GOLDEN))
    keep = h < jnp.uint32(_keep_threshold(keep_prob))
    return keep.reshape(B, S, E)


# --- wrapper -----------------------------------------------------------------------
def positional_encoding(x, pe, *, dropout_p=0.0, training=False, seed=0):
    """x: [B, S, E], pe: [S, E] -> [B, S, E] = dropout(x + pe)."""
    B, S, E = x.shape
    assert pe.shape == (S, E)
    SE = S * E

    # Lane-dense flattening: each row is one batch element's full (S*E) PE period,
    # so pe broadcasts over rows with no per-batch duplication in HBM.
    x2 = x.reshape(B, SE)
    pe2 = pe.reshape(1, SE)

    # Lane tile: multiple of 128 when possible (unmasked vst), capped at 2048.
    TL = min(SE, 2048) if SE % 128 == 0 else SE
    # Row tile: full batch when small, else 128-row blocks (multiple of 8).
    TB = B if B <= 128 else 128
    # Per-step f32 VMEM: ~2*(TB*TL + TB*TL + TL)*4 B <= ~4.1 MiB — well inside the
    # default scoped-VMEM limit on v5e/v6e/v7x; no vmem_limit_bytes override needed.

    grid = (pl.cdiv(B, TB), pl.cdiv(SE, TL))

    kernel = functools.partial(
        _pe_add_dropout_kernel,
        dropout_p=float(dropout_p),
        training=bool(training),
        se_len=SE,
    )
    seed_arr = jnp.asarray([seed], dtype=jnp.int32)

    out2 = pl.pallas_call(
        kernel,
        out_shape=jax.ShapeDtypeStruct((B, SE), x.dtype),
        grid_spec=pltpu.PrefetchScalarGridSpec(
            num_scalar_prefetch=1,                  # seed lands in SMEM
            grid=grid,
            in_specs=[
                pl.BlockSpec((TB, TL), lambda i, j, s: (i, j)),   # x tile
                pl.BlockSpec((1, TL), lambda i, j, s: (0, j)),    # pe tile (bcast rows)
            ],
            out_specs=pl.BlockSpec((TB, TL), lambda i, j, s: (i, j)),
        ),
        compiler_params=pltpu.CompilerParams(
            dimension_semantics=("parallel", "parallel"),         # v7x megacore-friendly
        ),
    )(seed_arr, x2, pe2)

    return out2.reshape(B, S, E)


if __name__ == "__main__":
    # Small shapes consistent with the module: pad_size (seq) = 8, embed = 32.
    B, S, E = 2, 8, 32
    dropout_p = 0.1

    key = jax.random.PRNGKey(0)
    x = jax.random.normal(key, (B, S, E), dtype=jnp.float32)
    pe = make_pe_table(embed=E, pad_size=S)
    ref = x + pe[None, :, :]

    # Eval-mode pass (dropout is identity) — must match x + pe exactly.
    out_eval = jax.block_until_ready(
        positional_encoding(x, pe, dropout_p=dropout_p, training=False))
    assert out_eval.shape == (B, S, E)
    assert jnp.allclose(out_eval, ref, atol=1e-6, rtol=1e-6)

    # Training-mode pass — verify against an exact plain-JAX replica of the
    # deterministic in-kernel dropout mask (no 'out==0 means dropped' ambiguity).
    seed = 1234  # NOTE: caller must advance the seed per training step.
    out_train = jax.block_until_ready(
        positional_encoding(x, pe, dropout_p=dropout_p, training=True, seed=seed))
    assert out_train.shape == (B, S, E)
    keep_prob = 1.0 - dropout_p
    keep = dropout_keep_mask(B, S, E, seed, dropout_p)
    expected = jnp.where(keep, ref * jnp.float32(1.0 / keep_prob), 0.0)
    assert jnp.allclose(out_train, expected, atol=1e-5, rtol=1e-5)
    # Sanity: dropout is actually active (mask is neither all-keep nor all-drop).
    assert bool(jnp.any(keep)) and bool(jnp.any(~keep))

    print("KERNEL_OK")
</pallas_src>

<mosaic_0001>
module attributes {stable_mosaic.version = 11 : i64} {
  func.func @_pe_add_dropout_kernel(%arg0: i32, %arg1: i32, %arg2: memref<1xi32, #tpu.memory_space<smem>>, %arg3: memref<2x256xf32, #tpu.memory_space<vmem>>, %arg4: memref<1x256xf32, #tpu.memory_space<vmem>>, %arg5: memref<2x256xf32, #tpu.memory_space<vmem>>) attributes {dimension_semantics = [#tpu.dimension_semantics<parallel>, #tpu.dimension_semantics<parallel>], iteration_bounds = array<i64: 1, 1>, scalar_prefetch = 1 : i64, scratch_operands = 0 : i64, tpu.core_type = #tpu.core_type<tc>, window_params = [{transform_indices = @transform_0, window_bounds = array<i64: 2, 256>}, {transform_indices = @transform_1, window_bounds = array<i64: 1, 256>}, {transform_indices = @transform_2, window_bounds = array<i64: 2, 256>}]} {
    %c0 = arith.constant 0 : index
    %c0_0 = arith.constant 0 : index
    %0 = vector.load %arg3[%c0, %c0_0] : memref<2x256xf32, #tpu.memory_space<vmem>>, vector<2x256xf32>
    %c0_1 = arith.constant 0 : index
    %c0_2 = arith.constant 0 : index
    %1 = vector.load %arg4[%c0_1, %c0_2] : memref<1x256xf32, #tpu.memory_space<vmem>>, vector<1x256xf32>
    %2 = vector.broadcast %1 : vector<1x256xf32> to vector<2x256xf32>
    %3 = arith.addf %0, %2 : vector<2x256xf32>
    %c0_3 = arith.constant 0 : index
    %c0_4 = arith.constant 0 : index
    %4 = vector.load %arg5[%c0_3, %c0_4] : memref<2x256xf32, #tpu.memory_space<vmem>>, vector<2x256xf32>
    tpu.vector_store %arg5[%c0_3, %c0_4], %3 {strides = array<i32>} : memref<2x256xf32, #tpu.memory_space<vmem>>, vector<2x256xf32>,
    return
  }
  func.func @transform_0(%arg0: i32, %arg1: i32, %arg2: memref<1xi32, #tpu.memory_space<smem>>) -> (i32, i32) {
    %c0_i32 = arith.constant 0 : i32
    return %arg0, %arg1 : i32, i32
  }
  func.func @transform_1(%arg0: i32, %arg1: i32, %arg2: memref<1xi32, #tpu.memory_space<smem>>) -> (i32, i32) {
    %c0_i32 = arith.constant 0 : i32
    %c0_i32_0 = arith.constant 0 : i32
    return %c0_i32, %arg1 : i32, i32
  }
  func.func @transform_2(%arg0: i32, %arg1: i32, %arg2: memref<1xi32, #tpu.memory_space<smem>>) -> (i32, i32) {
    %c0_i32 = arith.constant 0 : i32
    return %arg0, %arg1 : i32, i32
  }
}

</mosaic_0001>

<llo_original>
// kernel: tpu_custom_call.1
$region0: #{tpu_custom_call.1}
  #allocation0 [shape = 'u32[]', space=smem, size = 0x4, offset = 0x4, fixed_abs, tag = 'smem constant byte address 0x4 - core index']
  #allocation1 [shape = 'u32[144,128]{1,0:T(1,128)}', space=vmem, size = 0x12000, scoped, tag = 'internal scratch']
  #allocation2 [shape = 's32[1]{0}', space=sflag, size = 0x4, scoped, tag = 'scoped memory for tpu_custom_call.1']
  #allocation3 [shape = 's32[1]{0:T(128)S(6)}', space=smem, size = 0x200, scoped, tag = 'prefetched SMEM operand 0']
  %s0 = inlined_call_operand.<no memory space> [shape: s32[1], index: 0, kind: input, shape index: {}]
  %s1 = inlined_call_operand.hbm [shape: f32[2,256], index: 1, kind: input, shape index: {}]
  %s2 = inlined_call_operand.vmem [shape: f32[1,256], index: 2, kind: input, shape index: {}]
  %s3 = inlined_call_operand.hbm [shape: f32[2,256], index: 3, kind: output, shape index: {}]
  %s4 = sld [smem:[#allocation0]]
  $region22: #{tpu_custom_call.1} parent=0
    _
  %s6 = ssub.s32 1, %s4
  %s7 = scalar_select 0, %s6, %s4
  %8 = sst [smem:[#allocation3]] %s0
  $region1: #{tpu_custom_call.1} parent=0
    #allocation4 [shape = 'u8[2048]{0}', space=vmem, size = 0x800, scoped, tag = 'input window, operand 1, single buffered']
    #allocation5 [shape = 's32[1]{0}', space=sflag, size = 0x4, scoped, tag = 'scoped memory for tpu_custom_call.1']
    #allocation6 [shape = 's32[1]{0}', space=sflag, size = 0x4, scoped, tag = 'scoped memory for tpu_custom_call.1']
    #allocation7 [shape = 'u8[2048]{0}', space=vmem, size = 0x800, scoped, tag = 'output window, operand 0, single buffered']
    %9 = vsyncpa [#allocation5], 0
    %10 = vsyncpa [#allocation6], 0
    // Predicated region
    $region2: #{tpu_custom_call.1} parent=1 // pred_check
      _
    $region3: #{tpu_custom_call.1} parent=1 // pred_check_branch
      %12 = sbr.rel (0) target = $region5
    $region4: #{tpu_custom_call.1} parent=1 // pred_region
      %s14 = ssub.s32 64, 64
      %15 = vsyncadd [#allocation5], %s14
      %s17 = sshll.u32 [#allocation4], 4
      %s18 = int_to_ptr.vmem [resolvable:$true] %s17
      %20 = dma.hbm_to_vmem [thread:$0]  %s1, 64, %s18, [#allocation5]
    $region5: #{tpu_custom_call.1} parent=1 // pred_fallthru
      _
    // Predicated region
    $region6: #{tpu_custom_call.1} parent=1 // pred_check
      _
    $region7: #{tpu_custom_call.1} parent=1 // pred_check_branch
      %22 = sbr.rel (0) target = $region9
    $region8: #{tpu_custom_call.1} parent=1 // pred_region
      _
    $region9: #{tpu_custom_call.1} parent=1 // pred_fallthru
      _
    // Predicated region
    $region10: #{tpu_custom_call.1} parent=1 // pred_check
      _
    $region11: #{tpu_custom_call.1} parent=1 // pred_check_branch
      %24 = sbr.rel (0) target = $region13
    $region12: #{tpu_custom_call.1} parent=1 // pred_region
      %25 = dma.done [#allocation5], 64
    $region13: #{tpu_custom_call.1} parent=1 // pred_fallthru
      _
    %v26 = vld [vmem:[#allocation4] sm:$0xf]
    %v27 = vld [vmem:[%s2] sm:$0x3]
    %v29 = vlaneseq
    %v30 = vshrl.u32 %v29, 7
    %v31 = vsub.s32 0, %v30
    %v32 = vrot.slane %v27, %v31
    %v33 = vlaneseq
    %v34 = vshrl.u32 %v33, 7
    %v35 = vsub.s32 1, %v34
    %v36 = vrot.slane %v27, %v35
    %v37 = vcombine.low %v32, %v36
    %v39 = vunpack.c.l.s4 1983009808
    %v40 = vunpack.c.0.s8 %v39
    %v41 = vlaneseq
    %v42 = vshrl.u32 %v41, 7
    %v43 = vsub.s32 %v40, %v42
    %v44 = vrot.slane %v37, %v43
    %v46 = vadd.f32 %v26, %v44
    %47 = vst [vmem:[#allocation7] sm:$0xf] %v46
    // Predicated region
    $region14: #{tpu_custom_call.1} parent=1 // pred_check
      _
    $region15: #{tpu_custom_call.1} parent=1 // pred_check_branch
      %49 = sbr.rel (0) target = $region17
    $region16: #{tpu_custom_call.1} parent=1 // pred_region
      %s51 = ssub.s32 64, 64
      %52 = vsyncadd [#allocation6], %s51
      %s54 = sshll.u32 [#allocation7], 4
      %s55 = int_to_ptr.vmem [resolvable:$true] %s54
      %57 = dma.vmem_to_hbm [thread:$0]  %s55, 64, %s3, [#allocation6]
    $region17: #{tpu_custom_call.1} parent=1 // pred_fallthru
      _
    // Predicated region
    $region18: #{tpu_custom_call.1} parent=1 // pred_check
      _
    $region19: #{tpu_custom_call.1} parent=1 // pred_check_branch
      %59 = sbr.rel (0) target = $region21
    $region20: #{tpu_custom_call.1} parent=1 // pred_region
      %60 = dma.done [#allocation6], 64
    $region21: #{tpu_custom_call.1} parent=1 // pred_fallthru
      _
    %61 = vsyncpa [#allocation5], 1
    %62 = vsyncpa [#allocation6], 1

</llo_original>
